<compile_context>
chip_gen: v7x
topology: tpu7x:2x2x1
jax: 0.10.0
libtpu: 0.0.40
codegen_flags: <defaults>
</compile_context>

<pallas_src>
import functools

import jax
import jax.numpy as jnp
from jax.experimental import pallas as pl
from jax.experimental.pallas import tpu as pltpu


def _round_up(n, m):
    return ((n + m - 1) // m) * m


def _cdiv(a, b):
    return (a + b - 1) // b


def _crossnet_kernel(x_ref, kt_ref, c_ref, wp_ref, cr_ref, out_ref, *, layer_num):
    """One (batch-tile, out-col-tile) step of the collapsed CrossNet forward.

    x_ref:   (TB, D)    raw input rows
    kt_ref:  (D, Lp)    cross kernels, transposed & lane-padded   (MXU dtype)
    c_ref:   (1, Lp)    per-layer constants c_l = <beta_l, w_l>   (f32)
    wp_ref:  (D, TNw)   projection-weight column tile             (MXU dtype)
    cr_ref:  (1, TNo)   constant output row beta_L @ W + b_proj   (f32)
    out_ref: (TB, TNo)
    """
    xm = x_ref[...].astype(kt_ref.dtype)

    # All L cross dot-products <x_0, w_l> in ONE MXU matmul (no XLU reduces).
    s = jnp.dot(xm, kt_ref[...], preferred_element_type=jnp.float32)     # (TB, Lp)

    # Per-row scalar recurrence of the collapsed cross net (VPU, tiny).
    #   alpha_{l+1} = alpha_l * (1 + <x_0, w_l>) + <beta_l, w_l>
    # layer_num is small -> static unroll.  (Switch to lax.fori_loop(unroll=4)
    # if layer_num ever grows large, to bound vreg live ranges.)
    c_row = c_ref[...]
    alpha = jnp.ones((xm.shape[0], 1), jnp.float32)
    for l in range(layer_num):
        alpha = alpha * (1.0 + s[:, l:l + 1]) + c_row[:, l:l + 1]

    # Projection on the MXU (f32 accumulation), scaled by the per-row alpha:
    #   out = alpha_L * (x_0 @ W) + (beta_L @ W + b)
    proj = jnp.dot(xm, wp_ref[...], preferred_element_type=jnp.float32)  # (TB, TNw)
    ow = out_ref.shape[-1]
    out_ref[...] = (alpha * proj[:, :ow] + cr_ref[...]).astype(out_ref.dtype)


def crossnet_forward(x, kernels, biases, w_proj, b_proj, *,
                     weights_dtype=None, max_tile_b=1024,
                     vmem_budget_bytes=None, min_batch_steps=4):
    """CrossNet forward.

    x:        (B, D)  inputs
    kernels:  (L, D)  cross-layer kernels (each squeezed from (D, 1))
    biases:   (L, D)  cross-layer biases  (each squeezed from (D, 1))
    w_proj:   (D, O)  projection weight
    b_proj:   (O,) or (1, O) projection bias
    """
    B, D = x.shape
    L = kernels.shape[0]
    O = w_proj.shape[1]
    f32 = jnp.float32
    b_proj = jnp.reshape(b_proj, (1, O)).astype(f32)

    # ---- Batch-invariant constants of the collapsed recurrence (tiny). ------
    kern_f32 = kernels.astype(f32)
    bias_f32 = biases.astype(f32)
    beta_prefix = jnp.cumsum(bias_f32, axis=0) - bias_f32       # beta_l, l < L
    c = jnp.sum(beta_prefix * kern_f32, axis=1).reshape(1, L)   # <beta_l, w_l>
    beta_last = jnp.sum(bias_f32, axis=0)                       # beta_L
    const_row = beta_last @ w_proj.astype(f32) + b_proj         # (1, O) f32

    # ---- Lane padding --------------------------------------------------------
    # Weight / kernel lane widths always padded to 128 (free on the MXU, clean
    # lowering).  The OUTPUT is only padded when O >= 128: for small O the
    # O_pad/O HBM-writeback blowup would dominate on v5e, so the store stays
    # masked at width O.
    L_pad = _round_up(L, 128)
    O_mat = _round_up(O, 128)
    kern_t = jnp.pad(kern_f32.T, ((0, 0), (0, L_pad - L)))      # (D, L_pad)
    c = jnp.pad(c, ((0, 0), (0, L_pad - L)))                    # (1, L_pad)
    if O_mat != O:
        w_proj = jnp.pad(w_proj, ((0, 0), (0, O_mat - O)))

    if O >= 128:
        O_out = O_mat
        if O_mat <= 512:
            tile_nw = O_mat
        elif O_mat % 512 == 0:
            tile_nw = 512
        elif O_mat % 256 == 0:
            tile_nw = 256
        else:
            tile_nw = 128
        tile_no = tile_nw
    else:
        O_out = O            # unpadded output -> no writeback blowup
        tile_nw = O_mat      # single 128-wide weight column tile
        tile_no = O
    if O_out != O:
        const_row = jnp.pad(const_row, ((0, 0), (0, O_out - O)))
    n_o = O_mat // tile_nw

    # ---- MXU operand dtype: bf16 only when the weight is big enough for the
    # DMA / VMEM saving to matter; otherwise f32 (exact). ---------------------
    if weights_dtype is None:
        weights_dtype = jnp.bfloat16 if D * O_mat * 4 > (4 << 20) else jnp.float32
    w_proj = w_proj.astype(weights_dtype)
    kern_t = kern_t.astype(weights_dtype)
    # TODO(synk): optional fp8(e4m3) w_proj + per-column scale on v7x only.

    # ---- Generation-aware tile sizing (~75% of this chip's VMEM). -----------
    x_item = x.dtype.itemsize
    w_item = jnp.dtype(weights_dtype).itemsize
    out_item = x_item
    sublane = {4: 8, 2: 16, 1: 32}.get(x_item, 8)
    try:
        vmem_cap = int(pltpu.get_tpu_info().vmem_capacity_bytes)
    except Exception:                       # conservative fallback = v7x VMEM
        vmem_cap = 64 << 20
    if vmem_budget_bytes is None:
        vmem_budget_bytes = int(0.75 * vmem_cap)

    # Double-buffered invariant operands + double-buffered per-row streaming.
    fixed = 2 * (D * L_pad * w_item + L_pad * 4
                 + D * tile_nw * w_item + tile_no * 4)
    per_row = 2 * (D * x_item + tile_no * out_item)
    tile_b = max_tile_b
    while tile_b > sublane and fixed + tile_b * per_row > vmem_budget_bytes:
        tile_b //= 2
    tile_b = max(sublane, tile_b)
    tile_b = min(tile_b, _round_up(B, sublane))
    # Keep >= min_batch_steps grid steps along batch so both TensorCores of a
    # v7x chip get work via the "parallel" axes (harmless on 1-TC chips).
    if min_batch_steps > 1:
        tile_b = min(tile_b, max(sublane,
                                 _round_up(_cdiv(B, min_batch_steps), sublane)))
    tile_b = _round_up(tile_b, sublane)

    B_pad = _round_up(B, tile_b)
    if B_pad != B:
        x = jnp.pad(x, ((0, B_pad - B), (0, 0)))

    needed = fixed + tile_b * per_row + (8 << 20)
    vmem_limit = int(min(max(needed, 32 << 20), int(0.9 * vmem_cap)))

    kernel = functools.partial(_crossnet_kernel, layer_num=L)
    out = pl.pallas_call(
        kernel,
        out_shape=jax.ShapeDtypeStruct((B_pad, O_out), x.dtype),
        grid_spec=pltpu.PrefetchScalarGridSpec(
            num_scalar_prefetch=0,
            grid=(B_pad // tile_b, n_o),
            in_specs=[
                pl.BlockSpec((tile_b, D), lambda i, j: (i, 0)),     # x rows
                pl.BlockSpec((D, L_pad), lambda i, j: (0, 0)),      # kernels^T
                pl.BlockSpec((1, L_pad), lambda i, j: (0, 0)),      # c_l row
                pl.BlockSpec((D, tile_nw), lambda i, j: (0, j)),    # W column tile
                pl.BlockSpec((1, tile_no), lambda i, j: (0, j)),    # const out row
            ],
            out_specs=pl.BlockSpec((tile_b, tile_no), lambda i, j: (i, j)),
        ),
        compiler_params=pltpu.CompilerParams(
            dimension_semantics=("parallel", "parallel"),
            vmem_limit_bytes=vmem_limit),
        # NOTE: the grid-invariant operands (kernels^T, c, W tile, const row)
        # would ideally use pipeline_mode=pl.Buffered(1) to halve their VMEM;
        # kept at default double-buffering for lowering robustness.
    )(x, kern_t, c, w_proj, const_row)

    # Strip batch / lane padding.
    return out[:B, :O]


def crossnet_reference(x, kernels, biases, w_proj, b_proj):
    """Pure-JAX f32 reference mirroring the PyTorch forward exactly."""
    x0 = x[:, :, None]                                   # (B, D, 1)
    x_l = x0
    for i in range(kernels.shape[0]):
        w = kernels[i][:, None]                          # (D, 1)
        b = biases[i][:, None]                           # (D, 1)
        xl_w = jnp.tensordot(x_l, w, axes=([1], [0]))    # (B, 1, 1)
        dot_ = jnp.matmul(x0, xl_w)                      # (B, D, 1)
        x_l = dot_ + b + x_l
    x_l = jnp.squeeze(x_l, axis=2)                       # (B, D)
    return x_l @ w_proj + b_proj                         # (B, O)


if __name__ == "__main__":
    B, D, O, L = 16, 32, 16, 2

    key = jax.random.PRNGKey(0)
    k_x, k_kern, k_w, k_b, k_bias = jax.random.split(key, 5)

    x = jax.random.normal(k_x, (B, D), dtype=jnp.float32)

    # Cross-layer kernels: xavier_normal_ on (in_dim, 1) -> std = sqrt(2/(D+1))
    xavier_std = (2.0 / (D + 1)) ** 0.5
    kernels = xavier_std * jax.random.normal(k_kern, (L, D), dtype=jnp.float32)
    # The module initializes biases to zero; use small nonzero values here so
    # the full collapsed recurrence (beta / c terms) is exercised.
    biases = 0.1 * jax.random.normal(k_bias, (L, D), dtype=jnp.float32)

    # Projection (nn.Linear(in_dim, out_dim)) parameters.
    bound_w = (1.0 / D) ** 0.5
    w_proj = jax.random.uniform(k_w, (D, O), minval=-bound_w, maxval=bound_w,
                                dtype=jnp.float32)
    b_proj = jax.random.uniform(k_b, (1, O), minval=-bound_w, maxval=bound_w,
                                dtype=jnp.float32)

    out = crossnet_forward(x, kernels, biases, w_proj, b_proj)
    out = jax.block_until_ready(out)

    ref = crossnet_reference(x, kernels, biases, w_proj, b_proj)
    assert out.shape == (B, O)
    assert jnp.allclose(out, ref, atol=5e-2, rtol=2e-2), "mismatch vs reference"

    print("KERNEL_OK")
</pallas_src>

<mosaic_0001>
module attributes {stable_mosaic.version = 11 : i64} {
  func.func @_crossnet_kernel(%arg0: i32, %arg1: i32, %arg2: memref<8x32xf32, #tpu.memory_space<vmem>>, %arg3: memref<32x128xf32, #tpu.memory_space<vmem>>, %arg4: memref<1x128xf32, #tpu.memory_space<vmem>>, %arg5: memref<32x128xf32, #tpu.memory_space<vmem>>, %arg6: memref<1x16xf32, #tpu.memory_space<vmem>>, %arg7: memref<8x16xf32, #tpu.memory_space<vmem>>) attributes {dimension_semantics = [#tpu.dimension_semantics<parallel>, #tpu.dimension_semantics<parallel>], iteration_bounds = array<i64: 2, 1>, scalar_prefetch = 0 : i64, scratch_operands = 0 : i64, tpu.core_type = #tpu.core_type<tc>, window_params = [{transform_indices = @transform_0, window_bounds = array<i64: 8, 32>}, {pipeline_mode = #tpu.pipeline_mode<synchronous>, transform_indices = @transform_1, window_bounds = array<i64: 32, 128>}, {pipeline_mode = #tpu.pipeline_mode<synchronous>, transform_indices = @transform_2, window_bounds = array<i64: 1, 128>}, {transform_indices = @transform_3, window_bounds = array<i64: 32, 128>}, {transform_indices = @transform_4, window_bounds = array<i64: 1, 16>}, {transform_indices = @transform_5, window_bounds = array<i64: 8, 16>}]} {
    %c0 = arith.constant 0 : index
    %c0_0 = arith.constant 0 : index
    %0 = vector.load %arg2[%c0, %c0_0] : memref<8x32xf32, #tpu.memory_space<vmem>>, vector<8x32xf32>
    %c0_1 = arith.constant 0 : index
    %c0_2 = arith.constant 0 : index
    %1 = vector.load %arg3[%c0_1, %c0_2] : memref<32x128xf32, #tpu.memory_space<vmem>>, vector<32x128xf32>
    %cst = arith.constant dense<0.000000e+00> : vector<8x128xf32>
    %2 = tpu.matmul %0, %1, %cst {dimension_numbers = #tpu.dot_dimension_numbers<[1], [0], [0], [1], [0, 0, 1, 1], [], []>} : vector<8x32xf32>, vector<32x128xf32>, vector<8x128xf32> -> vector<8x128xf32>
    %c0_3 = arith.constant 0 : index
    %c0_4 = arith.constant 0 : index
    %3 = vector.load %arg4[%c0_3, %c0_4] : memref<1x128xf32, #tpu.memory_space<vmem>>, vector<1x128xf32>
    %cst_5 = arith.constant 1.000000e+00 : f32
    %4 = vector.broadcast %cst_5 : f32 to vector<8x1xf32>
    %5 = vector.extract_strided_slice %2 {offsets = [0, 0], sizes = [8, 1], strides = [1, 1]} : vector<8x128xf32> to vector<8x1xf32>
    %cst_6 = arith.constant 1.000000e+00 : f32
    %6 = vector.broadcast %cst_6 : f32 to vector<8x1xf32>
    %7 = arith.addf %6, %5 : vector<8x1xf32>
    %8 = arith.mulf %4, %7 : vector<8x1xf32>
    %9 = vector.extract_strided_slice %3 {offsets = [0, 0], sizes = [1, 1], strides = [1, 1]} : vector<1x128xf32> to vector<1x1xf32>
    %10 = vector.broadcast %9 : vector<1x1xf32> to vector<8x1xf32>
    %11 = arith.addf %8, %10 : vector<8x1xf32>
    %12 = vector.extract_strided_slice %2 {offsets = [0, 1], sizes = [8, 1], strides = [1, 1]} : vector<8x128xf32> to vector<8x1xf32>
    %cst_7 = arith.constant 1.000000e+00 : f32
    %13 = vector.broadcast %cst_7 : f32 to vector<8x1xf32>
    %14 = arith.addf %13, %12 : vector<8x1xf32>
    %15 = arith.mulf %11, %14 : vector<8x1xf32>
    %16 = vector.extract_strided_slice %3 {offsets = [0, 1], sizes = [1, 1], strides = [1, 1]} : vector<1x128xf32> to vector<1x1xf32>
    %17 = vector.broadcast %16 : vector<1x1xf32> to vector<8x1xf32>
    %18 = arith.addf %15, %17 : vector<8x1xf32>
    %c0_8 = arith.constant 0 : index
    %c0_9 = arith.constant 0 : index
    %19 = vector.load %arg5[%c0_8, %c0_9] : memref<32x128xf32, #tpu.memory_space<vmem>>, vector<32x128xf32>
    %cst_10 = arith.constant dense<0.000000e+00> : vector<8x128xf32>
    %20 = tpu.matmul %0, %19, %cst_10 {dimension_numbers = #tpu.dot_dimension_numbers<[1], [0], [0], [1], [0, 0, 1, 1], [], []>} : vector<8x32xf32>, vector<32x128xf32>, vector<8x128xf32> -> vector<8x128xf32>
    %21 = vector.extract_strided_slice %20 {offsets = [0, 0], sizes = [8, 16], strides = [1, 1]} : vector<8x128xf32> to vector<8x16xf32>
    %22 = vector.broadcast %18 : vector<8x1xf32> to vector<8x16xf32>
    %23 = arith.mulf %22, %21 : vector<8x16xf32>
    %c0_11 = arith.constant 0 : index
    %c0_12 = arith.constant 0 : index
    %24 = vector.load %arg6[%c0_11, %c0_12] : memref<1x16xf32, #tpu.memory_space<vmem>>, vector<1x16xf32>
    %25 = vector.broadcast %24 : vector<1x16xf32> to vector<8x16xf32>
    %26 = arith.addf %23, %25 : vector<8x16xf32>
    %c0_13 = arith.constant 0 : index
    %c0_14 = arith.constant 0 : index
    %27 = vector.load %arg7[%c0_13, %c0_14] : memref<8x16xf32, #tpu.memory_space<vmem>>, vector<8x16xf32>
    tpu.vector_store %arg7[%c0_13, %c0_14], %26 {strides = array<i32>} : memref<8x16xf32, #tpu.memory_space<vmem>>, vector<8x16xf32>,
    return
  }
  func.func @transform_0(%arg0: i32, %arg1: i32) -> (i32, i32) {
    %c0_i32 = arith.constant 0 : i32
    %c0_i32_0 = arith.constant 0 : i32
    return %arg0, %c0_i32 : i32, i32
  }
  func.func @transform_1(%arg0: i32, %arg1: i32) -> (i32, i32) {
    %c0_i32 = arith.constant 0 : i32
    %c0_i32_0 = arith.constant 0 : i32
    %c0_i32_1 = arith.constant 0 : i32
    return %c0_i32, %c0_i32_0 : i32, i32
  }
  func.func @transform_2(%arg0: i32, %arg1: i32) -> (i32, i32) {
    %c0_i32 = arith.constant 0 : i32
    %c0_i32_0 = arith.constant 0 : i32
    %c0_i32_1 = arith.constant 0 : i32
    return %c0_i32, %c0_i32_0 : i32, i32
  }
  func.func @transform_3(%arg0: i32, %arg1: i32) -> (i32, i32) {
    %c0_i32 = arith.constant 0 : i32
    %c0_i32_0 = arith.constant 0 : i32
    return %c0_i32, %arg1 : i32, i32
  }
  func.func @transform_4(%arg0: i32, %arg1: i32) -> (i32, i32) {
    %c0_i32 = arith.constant 0 : i32
    %c0_i32_0 = arith.constant 0 : i32
    return %c0_i32, %arg1 : i32, i32
  }
  func.func @transform_5(%arg0: i32, %arg1: i32) -> (i32, i32) {
    %c0_i32 = arith.constant 0 : i32
    return %arg0, %arg1 : i32, i32
  }
}

</mosaic_0001>

<llo_original>
// kernel: tpu_custom_call.1
$region0: #{tpu_custom_call.1}
  #allocation0 [shape = 'u32[]', space=smem, size = 0x4, offset = 0x4, fixed_abs, tag = 'smem constant byte address 0x4 - core index']
  #allocation1 [shape = 'u32[144,128]{1,0:T(1,128)}', space=vmem, size = 0x12000, scoped, tag = 'internal scratch']
  %s0 = inlined_call_operand.hbm [shape: f32[16,32], index: 0, kind: input, shape index: {}]
  %s1 = inlined_call_operand.hbm [shape: f32[32,128], index: 1, kind: input, shape index: {}]
  %s2 = inlined_call_operand.vmem [shape: f32[1,128], index: 2, kind: input, shape index: {}]
  %s3 = inlined_call_operand.hbm [shape: f32[32,128], index: 3, kind: input, shape index: {}]
  %s4 = inlined_call_operand.vmem [shape: f32[1,16], index: 4, kind: input, shape index: {}]
  %s5 = inlined_call_operand.hbm [shape: f32[16,16], index: 5, kind: output, shape index: {}]
  %s6 = sld [smem:[#allocation0]]
  $region65: #{tpu_custom_call.1} parent=0
    _
  %s8 = ssub.s32 1, %s6
  %s9 = scalar_select 0, %s8, %s6
  $region1: #{tpu_custom_call.1} parent=0
    #allocation2 [shape = 'u8[8192]{0}', space=vmem, size = 0x2000, scoped, tag = 'input window, operand 0']
    #allocation3 [shape = 's32[2]{0}', space=sflag, size = 0x8, scoped, tag = 'scoped memory for tpu_custom_call.1']
    #allocation4 [shape = 's32[2]{0}', space=sflag, size = 0x8, scoped, tag = 'scoped memory for tpu_custom_call.1']
    #allocation5 [shape = 'u8[16384]{0}', space=vmem, size = 0x4000, scoped, tag = 'input window, operand 1, single buffered']
    #allocation6 [shape = 's32[1]{0}', space=sflag, size = 0x4, scoped, tag = 'scoped memory for tpu_custom_call.1']
    #allocation7 [shape = 'u8[16384]{0}', space=vmem, size = 0x4000, scoped, tag = 'input window, operand 3, single buffered']
    #allocation8 [shape = 'u8[8192]{0}', space=vmem, size = 0x2000, scoped, tag = 'output window, operand 0']
    %10 = vsyncpa [#allocation3], 0
    %s11 = scalar_lea.sflag [#allocation3], 1
    %12 = vsyncpa %s11, 0
    %13 = vsyncpa [#allocation6], 0
    %14 = vsyncpa [#allocation4], 0
    %s15 = scalar_lea.sflag [#allocation4], 1
    %16 = vsyncpa %s15, 0
    loop: start=0, step=1, limit=4
    $region2: #{tpu_custom_call.1} parent=1 // loop_pre_header
      _
    $region3: #{tpu_custom_call.1} parent=1 // loop_header
      %s18 = sphi 0, %s22
      %p19 = scmp.ge.s32.totalorder %s18, 4
      %s25 = sphi 0, %s37
      %s26 = sphi 0, %s33
      %s27 = sphi 0, %s25
      %s28 = sphi 0, %s26
      %s29 = sphi 0, %s27
      %s30 = sphi 0, %s28
      %s40 = sphi 0, %s42
      %s43 = sphi 0, %s40
      %s44 = sphi 0, %s43
      %s60 = sphi 0, %s44
      %s64 = sphi 0, %s64
      %s66 = sphi 0, %s64
      %s67 = sphi 0, %s66
      %s81 = sphi 0, %s67
      %s85 = sphi 0, %s85
      %s87 = sphi 0, %s85
      %s88 = sphi 0, %s87
      %s102 = sphi 0, %s88
      %s108 = sphi 0, %s110
      %s111 = sphi 0, %s108
      %s112 = sphi 0, %s111
      %s128 = sphi 0, %s112
      %s134 = sphi 0, %s136
      %s137 = sphi 0, %s134
      %s138 = sphi 0, %s137
      %s154 = sphi 0, %s138
      %s162 = sphi 0, %s164
      %s165 = sphi 0, %s162
      %s166 = sphi 0, %s165
      %s182 = sphi 0, %s166
    $region4: #{tpu_custom_call.1} parent=1 // loop_header_branch
      %21 = sbr.rel (%p19) target = $region8
    $region5: #{tpu_custom_call.1} parent=1 // loop_body
      %s23 = ssub.s32 %s18, 1
      %s24 = ssub.s32 %s18, 2
      %s31 = sadd.s32 1, %s26
      %p32 = scmp.ge.s32.totalorder %s31, 1
      %s33 = scalar_select %p32, 0, %s31
      %s34 = sadd.s32 1, %s25
      %s35 = scalar_select %p32, %s34, %s25
      %p36 = scmp.ge.s32.totalorder %s35, 2
      %s37 = scalar_select %p36, 0, %s35
      %s38 = ssub.s32 %s25, %s37
      %p39 = scmp.eq.s32.totalorder %s38, 0
      %s41 = sadd.s32 %s40, 1
      %s42 = scalar_select %p39, %s40, %s41
      %p45 = pneg %p39
      %p46 = scmp.eq.s32.totalorder %s18, 1
      %p47 = por %p45, %p46
      %p48 = scmp.ne.s32.totalorder %s40, %s43
      %p49 = scmp.eq.s32.totalorder %s18, 0
      %p50 = por %p48, %p49
      %p51 = scmp.ne.s32.totalorder %s40, %s43
      %p52 = scmp.eq.s32.totalorder %s23, 1
      %p53 = por %p51, %p52
      %p54 = scmp.ne.s32.totalorder %s43, %s44
      %p55 = scmp.eq.s32.totalorder %s23, 0
      %p56 = por %p54, %p55
      %p57 = scmp.ne.s32.totalorder %s43, %s44
      %p58 = scmp.eq.s32.totalorder %s24, 1
      %p59 = por %p57, %p58
      %p61 = scmp.ne.s32.totalorder %s44, %s60
      %p62 = scmp.eq.s32.totalorder %s24, 0
      %p63 = por %p61, %p62
      %s65 = sadd.s32 %s64, 1
      %p68 = scmp.eq.s32.totalorder %s18, 1
      %p69 = scmp.ne.s32.totalorder %s64, %s66
      %p70 = scmp.eq.s32.totalorder %s18, 0
      %p71 = por %p69, %p70
      %p72 = scmp.ne.s32.totalorder %s64, %s66
      %p73 = scmp.eq.s32.totalorder %s23, 1
      %p74 = por %p72, %p73
      %p75 = scmp.ne.s32.totalorder %s66, %s67
      %p76 = scmp.eq.s32.totalorder %s23, 0
      %p77 = por %p75, %p76
      %p78 = scmp.ne.s32.totalorder %s66, %s67
      %p79 = scmp.eq.s32.totalorder %s24, 1
      %p80 = por %p78, %p79
      %p82 = scmp.ne.s32.totalorder %s67, %s81
      %p83 = scmp.eq.s32.totalorder %s24, 0
      %p84 = por %p82, %p83
      %s86 = sadd.s32 %s85, 1
      %p89 = scmp.eq.s32.totalorder %s18, 1
      %p90 = scmp.ne.s32.totalorder %s85, %s87
      %p91 = scmp.eq.s32.totalorder %s18, 0
      %p92 = por %p90, %p91
      %p93 = scmp.ne.s32.totalorder %s85, %s87
      %p94 = scmp.eq.s32.totalorder %s23, 1
      %p95 = por %p93, %p94
      %p96 = scmp.ne.s32.totalorder %s87, %s88
      %p97 = scmp.eq.s32.totalorder %s23, 0
      %p98 = por %p96, %p97
      %p99 = scmp.ne.s32.totalorder %s87, %s88
      %p100 = scmp.eq.s32.totalorder %s24, 1
      %p101 = por %p99, %p100
      %p103 = scmp.ne.s32.totalorder %s88, %s102
      %p104 = scmp.eq.s32.totalorder %s24, 0
      %p105 = por %p103, %p104
      %s106 = ssub.s32 %s26, %s33
      %p107 = scmp.eq.s32.totalorder %s106, 0
      %s109 = sadd.s32 %s108, 1
      %s110 = scalar_select %p107, %s108, %s109
      %p113 = pneg %p107
      %p114 = scmp.eq.s32.totalorder %s18, 1
      %p115 = por %p113, %p114
      %p116 = scmp.ne.s32.totalorder %s108, %s111
      %p117 = scmp.eq.s32.totalorder %s18, 0
      %p118 = por %p116, %p117
      %p119 = scmp.ne.s32.totalorder %s108, %s111
      %p120 = scmp.eq.s32.totalorder %s23, 1
      %p121 = por %p119, %p120
      %p122 = scmp.ne.s32.totalorder %s111, %s112
      %p123 = scmp.eq.s32.totalorder %s23, 0
      %p124 = por %p122, %p123
      %p125 = scmp.ne.s32.totalorder %s111, %s112
      %p126 = scmp.eq.s32.totalorder %s24, 1
      %p127 = por %p125, %p126
      %p129 = scmp.ne.s32.totalorder %s112, %s128
      %p130 = scmp.eq.s32.totalorder %s24, 0
      %p131 = por %p129, %p130
      %s132 = ssub.s32 %s26, %s33
      %p133 = scmp.eq.s32.totalorder %s132, 0
      %s135 = sadd.s32 %s134, 1
      %s136 = scalar_select %p133, %s134, %s135
      %p139 = pneg %p133
      %p140 = scmp.eq.s32.totalorder %s18, 1
      %p141 = por %p139, %p140
      %p142 = scmp.ne.s32.totalorder %s134, %s137
      %p143 = scmp.eq.s32.totalorder %s18, 0
      %p144 = por %p142, %p143
      %p145 = scmp.ne.s32.totalorder %s134, %s137
      %p146 = scmp.eq.s32.totalorder %s23, 1
      %p147 = por %p145, %p146
      %p148 = scmp.ne.s32.totalorder %s137, %s138
      %p149 = scmp.eq.s32.totalorder %s23, 0
      %p150 = por %p148, %p149
      %p151 = scmp.ne.s32.totalorder %s137, %s138
      %p152 = scmp.eq.s32.totalorder %s24, 1
      %p153 = por %p151, %p152
      %p155 = scmp.ne.s32.totalorder %s138, %s154
      %p156 = scmp.eq.s32.totalorder %s24, 0
      %p157 = por %p155, %p156
      %s158 = ssub.s32 %s25, %s37
      %s159 = ssub.s32 %s26, %s33
      %s160 = sor.u32 %s158, %s159
      %p161 = scmp.eq.s32.totalorder %s160, 0
      %s163 = sadd.s32 %s162, 1
      %s164 = scalar_select %p161, %s162, %s163
      %p167 = pneg %p161
      %p168 = scmp.eq.s32.totalorder %s18, 1
      %p169 = por %p167, %p168
      %p170 = scmp.ne.s32.totalorder %s162, %s165
      %p171 = scmp.eq.s32.totalorder %s18, 0
      %p172 = por %p170, %p171
      %p173 = scmp.ne.s32.totalorder %s162, %s165
      %p174 = scmp.eq.s32.totalorder %s23, 1
      %p175 = por %p173, %p174
      %p176 = scmp.ne.s32.totalorder %s165, %s166
      %p177 = scmp.eq.s32.totalorder %s23, 0
      %p178 = por %p176, %p177
      %p179 = scmp.ne.s32.totalorder %s165, %s166
      %p180 = scmp.eq.s32.totalorder %s24, 1
      %p181 = por %p179, %p180
      %p183 = scmp.ne.s32.totalorder %s166, %s182
      %p184 = scmp.eq.s32.totalorder %s24, 0
      %p185 = por %p183, %p184
      %p186 = scmp.le.s32.totalorder 1, %s18
      %p187 = scmp.lt.s32.totalorder %s18, 3
      %p188 = pnand %p186, %p187
      %p189 = pneg %p188
      // Predicated region
      $region9: #{tpu_custom_call.1} parent=5 // pred_check
        _
      $region10: #{tpu_custom_call.1} parent=5 // pred_check_branch
        %191 = sbr.rel (%p188) target = $region12
      $region11: #{tpu_custom_call.1} parent=5 // pred_region
        %s192 = ssub.s32 %s18, 1
        // Predicated region
        $region13: #{tpu_custom_call.1} parent=11 // pred_check
          %p193 = pneg %p77
        $region14: #{tpu_custom_call.1} parent=11 // pred_check_branch
          %195 = sbr.rel (%p193) target = $region16
        $region15: #{tpu_custom_call.1} parent=11 // pred_region
          %s197 = ssub.s32 512, 512
          %198 = vsyncadd [#allocation6], %s197
          %s199 = sshll.u32 [#allocation5], 4
          %s200 = int_to_ptr.vmem [resolvable:$true] %s199
          %205 = dma.hbm_to_vmem [thread:$0]  %s1, 512, %s200, [#allocation6], 128, 128, 8
        $region16: #{tpu_custom_call.1} parent=11 // pred_fallthru
          _
        // Predicated region
        $region17: #{tpu_custom_call.1} parent=11 // pred_check
          %p206 = pneg %p98
        $region18: #{tpu_custom_call.1} parent=11 // pred_check_branch
          %208 = sbr.rel (%p206) target = $region20
        $region19: #{tpu_custom_call.1} parent=11 // pred_region
          _
        $region20: #{tpu_custom_call.1} parent=11 // pred_fallthru
          _
        // Predicated region
        $region21: #{tpu_custom_call.1} parent=11 // pred_check
          %p209 = pneg %p124
        $region22: #{tpu_custom_call.1} parent=11 // pred_check_branch
          %211 = sbr.rel (%p209) target = $region24
        $region23: #{tpu_custom_call.1} parent=11 // pred_region
          %s213 = ssub.s32 512, 512
          %214 = vsyncadd [#allocation6], %s213
          %s215 = smul.addr %s28, 128
          %s216 = scalar_lea.hbm %s3, %s215
          %s217 = sshll.u32 [#allocation7], 4
          %s218 = int_to_ptr.vmem [resolvable:$true] %s217
          %223 = dma.hbm_to_vmem [thread:$0]  %s216, 512, %s218, [#allocation6], 128, 128, 8
        $region24: #{tpu_custom_call.1} parent=11 // pred_fallthru
          _
        // Predicated region
        $region25: #{tpu_custom_call.1} parent=11 // pred_check
          %p224 = pneg %p150
        $region26: #{tpu_custom_call.1} parent=11 // pred_check_branch
          %226 = sbr.rel (%p224) target = $region28
        $region27: #{tpu_custom_call.1} parent=11 // pred_region
          %p227 = scmp.lt.s32.totalorder %s28, 0
          %s228 = scalar_select %p227, %s28, 0
          %s229 = scalar_lea.vmem %s4, %s228
        $region28: #{tpu_custom_call.1} parent=11 // pred_fallthru
          _
      $region12: #{tpu_custom_call.1} parent=5 // pred_fallthru
        _
      %p230 = scmp.lt.s32.totalorder %s18, 2
      // Predicated region
      $region29: #{tpu_custom_call.1} parent=5 // pred_check
        %p231 = pneg %p230
      $region30: #{tpu_custom_call.1} parent=5 // pred_check_branch
        %233 = sbr.rel (%p231) target = $region32
      $region31: #{tpu_custom_call.1} parent=5 // pred_region
        // Predicated region
        $region33: #{tpu_custom_call.1} parent=31 // pred_check
          %p234 = pneg %p50
        $region34: #{tpu_custom_call.1} parent=31 // pred_check_branch
          %236 = sbr.rel (%p234) target = $region36
        $region35: #{tpu_custom_call.1} parent=31 // pred_region
          %s237 = sand.u32 %s40, 1
          %s238 = scalar_lea.sflag [#allocation3], %s237
          %s239 = sand.u32 %s40, 1
          %s240 = smul.addr %s239, 8
          %s241 = scalar_lea.vmem [#allocation2], %s240
          %s243 = ssub.s32 128, 128
          %244 = vsyncadd %s238, %s243
          %s245 = smul.addr %s25, 128
          %s246 = scalar_lea.hbm %s0, %s245
          %s248 = sshll.u32 %s241, 4
          %s249 = int_to_ptr.vmem [resolvable:$true] %s248
          %251 = dma.hbm_to_vmem [thread:$0]  %s246, 128, %s249, %s238
        $region36: #{tpu_custom_call.1} parent=31 // pred_fallthru
          _
      $region32: #{tpu_custom_call.1} parent=5 // pred_fallthru
        _
      %p252 = scmp.le.s32.totalorder 1, %s18
      %p253 = scmp.lt.s32.totalorder %s18, 3
      %p254 = pnand %p252, %p253
      %p255 = pneg %p254
      // Predicated region
      $region37: #{tpu_custom_call.1} parent=5 // pred_check
        _
      $region38: #{tpu_custom_call.1} parent=5 // pred_check_branch
        %257 = sbr.rel (%p254) target = $region40
      $region39: #{tpu_custom_call.1} parent=5 // pred_region
        %s258 = ssub.s32 %s18, 1
        %s259 = sand.u32 %s43, 1
        %s260 = scalar_lea.sflag [#allocation3], %s259
        %s261 = sand.u32 %s43, 1
        %s262 = smul.addr %s261, 8
        %s263 = scalar_lea.vmem [#allocation2], %s262
        // Predicated region
        $region41: #{tpu_custom_call.1} parent=39 // pred_check
          %p264 = pneg %p56
        $region42: #{tpu_custom_call.1} parent=39 // pred_check_branch
          %266 = sbr.rel (%p264) target = $region44
        $region43: #{tpu_custom_call.1} parent=39 // pred_region
          %267 = dma.done %s260, 128
        $region44: #{tpu_custom_call.1} parent=39 // pred_fallthru
          _
        // Predicated region
        $region45: #{tpu_custom_call.1} parent=39 // pred_check
          %p268 = pneg %p77
        $region46: #{tpu_custom_call.1} parent=39 // pred_check_branch
          %270 = sbr.rel (%p268) target = $region48
        $region47: #{tpu_custom_call.1} parent=39 // pred_region
          %271 = dma.done [#allocation6], 512
        $region48: #{tpu_custom_call.1} parent=39 // pred_fallthru
          _
        // Predicated region
        $region49: #{tpu_custom_call.1} parent=39 // pred_check
          %p272 = pneg %p124
        $region50: #{tpu_custom_call.1} parent=39 // pred_check_branch
          %274 = sbr.rel (%p272) target = $region52
        $region51: #{tpu_custom_call.1} parent=39 // pred_region
          %275 = dma.done [#allocation6], 512
        $region52: #{tpu_custom_call.1} parent=39 // pred_fallthru
          _
        %s276 = sand.u32 %s43, 1
        %s277 = scalar_lea.sflag [#allocation3], %s276
        %s278 = sand.u32 %s43, 1
        %s279 = smul.addr %s278, 8
        %s280 = scalar_lea.vmem [#allocation2], %s279
        %p281 = pneg %p56
        %p282 = pneg %p53
        %p283 = pneg %p77
        %p284 = pneg %p74
        %p285 = pneg %p98
        %p286 = pneg %p95
        %p287 = pneg %p124
        %p288 = pneg %p121
        %p289 = scmp.lt.s32.totalorder %s28, 0
        %s290 = scalar_select %p289, %s28, 0
        %s291 = scalar_lea.vmem %s4, %s290
        %p292 = pneg %p150
        %p293 = pneg %p147
        %p294 = pneg %p178
        %p295 = pneg %p175
        %s296 = sand.u32 %s165, 1
        %s297 = scalar_lea.sflag [#allocation4], %s296
        %s298 = sand.u32 %s165, 1
        %s299 = smul.addr %s298, 8
        %s300 = scalar_lea.vmem [#allocation8], %s299
        %p301 = scmp.lt.s32.totalorder %s28, 0
        %s302 = scalar_select %p301, %s28, 0
        %s303 = scalar_lea.vmem %s4, %s302
        %v304 = vld [vmem:[%s263] sm:$0xff]
        %v305 = vld [vmem:[#allocation5] sm:$0xff]
        %v306 = vld [vmem:[#allocation5 + $0x8] sm:$0xff]
        %v307 = vld [vmem:[#allocation5 + $0x10] sm:$0xff]
        %v308 = vld [vmem:[#allocation5 + $0x18] sm:$0xff]
        %vm309 = vcmask 261120
        %v311 = vsel %vm309, %v304, 0
        %313 = vmatprep.subr.mxu0 0.0
        %314 = vmatpush1.msra.mxu0 %v305
        %315 = vmatprep.subr.mxu0 0.0
        %316 = vmatpush1.msra.mxu0 %v306
        %317 = vmatprep.subr.mxu0 0.0
        %318 = vmatpush1.msra.mxu0 %v307
        %319 = vmatprep.subr.mxu0 0.0
        %320 = vmatpush1.msra.mxu0 %v308
        %321 = vmatprep.subr.mxu0 0.0
        %322 = vmatpush1.msra.mxu0 0.0
        %323 = vmatprep.subr.mxu0 0.0
        %324 = vmatpush1.msra.mxu0 0.0
        %325 = vmatprep.subr.mxu0 0.0
        %326 = vmatpush1.msra.mxu0 0.0
        %327 = vmatprep.subr.mxu0 0.0
        %328 = vmatpush1.msra.mxu0 0.0
        %329 = vmatprep.subr.mxu0 0.0
        %330 = vmatpush1.msra.mxu0 0.0
        %331 = vmatprep.subr.mxu0 0.0
        %332 = vmatpush1.msra.mxu0 0.0
        %333 = vmatprep.subr.mxu0 0.0
        %334 = vmatpush1.msra.mxu0 0.0
        %335 = vmatprep.subr.mxu0 0.0
        %336 = vmatpush1.msra.mxu0 0.0
        %337 = vmatprep.subr.mxu0 0.0
        %338 = vmatpush1.msra.mxu0 0.0
        %339 = vmatprep.subr.mxu0 0.0
        %340 = vmatpush1.msra.mxu0 0.0
        %341 = vmatprep.subr.mxu0 0.0
        %342 = vmatpush1.msra.mxu0 0.0
        %343 = vmatprep.subr.mxu0 0.0
        %344 = vmatpush1.msra.mxu0 0.0
        %345 = vmatprep.subr.mxu0 0.0
        %346 = vmatpush1.msra.mxu0 0.0
        %347 = vmatprep.subr.mxu0 0.0
        %348 = vmatpush1.msra.mxu0 0.0
        %349 = vmatprep.subr.mxu0 0.0
        %350 = vmatpush1.msra.mxu0 0.0
        %351 = vmatprep.subr.mxu0 0.0
        %352 = vmatpush1.msra.mxu0 0.0
        %353 = vmatprep.subr.mxu0 0.0
        %354 = vmatpush1.msra.mxu0 0.0
        %355 = vmatprep.subr.mxu0 0.0
        %356 = vmatpush1.msra.mxu0 0.0
        %357 = vmatprep.subr.mxu0 0.0
        %358 = vmatpush1.msra.mxu0 0.0
        %359 = vmatprep.subr.mxu0 0.0
        %360 = vmatpush1.msra.mxu0 0.0
        %361 = vmatprep.subr.mxu0 0.0
        %362 = vmatpush1.msra.mxu0 0.0
        %363 = vmatprep.subr.mxu0 0.0
        %364 = vmatpush1.msra.mxu0 0.0
        %365 = vmatprep.subr.mxu0 0.0
        %366 = vmatpush1.msra.mxu0 0.0
        %367 = vmatprep.subr.mxu0 0.0
        %368 = vmatpush1.msra.mxu0 0.0
        %369 = vmatprep.subr.mxu0 0.0
        %370 = vmatpush1.msra.mxu0 0.0
        %371 = vmatprep.subr.mxu0 0.0
        %372 = vmatpush1.msra.mxu0 0.0
        %373 = vmatprep.subr.mxu0 0.0
        %374 = vmatpush1.msra.mxu0 0.0
        %375 = vmatprep.subr.mxu0 0.0
        %376 = vmatpush1.msra.mxu0 0.0
        %377 = vmatprep.mubr.f32.mxu0 0.0
        %378 = vmatmul.mubr.f32.gmra.mrb[0].mxu0 %v311
        %v379 = vpop.f32.mrb[0].mxu0
        %v380 = vadd.f32 0.0, %v379
        %v381 = vpop.f32.mrb[0].mxu0
        %382 = vdwg.mxu0
        %v383 = vld [vmem:[%s2] sm:$0x1]
        %v384 = vadd.f32 %v380, 1.0
        %v386 = vlaneseq
        %v387 = vshrl.u32 %v386, 7
        %v388 = vsub.s32 0, %v387
        %v389 = vrot.slane %v383, %v388
        %v391 = vadd.f32 %v384, %v389
        %393 = vrot.lane.b32.xlu0 %v384, 127
        %v394 = vpop.permute.xlu0 %393
        %v396 = vmul.f32 %v391, %v394
        %397 = vrot.lane.b32.xlu0 %v389, 127
        %v398 = vpop.permute.xlu0 %397
        %v400 = vadd.f32 %v396, %v398
        %v401 = vld [vmem:[#allocation7] sm:$0xff]
        %v402 = vld [vmem:[#allocation7 + $0x8] sm:$0xff]
        %v403 = vld [vmem:[#allocation7 + $0x10] sm:$0xff]
        %v404 = vld [vmem:[#allocation7 + $0x18] sm:$0xff]
        %405 = vmatprep.subr.mxu0 0.0
        %406 = vmatpush1.msra.mxu0 %v401
        %407 = vmatprep.subr.mxu0 0.0
        %408 = vmatpush1.msra.mxu0 %v402
        %409 = vmatprep.subr.mxu0 0.0
        %410 = vmatpush1.msra.mxu0 %v403
        %411 = vmatprep.subr.mxu0 0.0
        %412 = vmatpush1.msra.mxu0 %v404
        %413 = vmatprep.subr.mxu0 0.0
        %414 = vmatpush1.msra.mxu0 0.0
        %415 = vmatprep.subr.mxu0 0.0
        %416 = vmatpush1.msra.mxu0 0.0
        %417 = vmatprep.subr.mxu0 0.0
        %418 = vmatpush1.msra.mxu0 0.0
        %419 = vmatprep.subr.mxu0 0.0
        %420 = vmatpush1.msra.mxu0 0.0
        %421 = vmatprep.subr.mxu0 0.0
        %422 = vmatpush1.msra.mxu0 0.0
        %423 = vmatprep.subr.mxu0 0.0
        %424 = vmatpush1.msra.mxu0 0.0
        %425 = vmatprep.subr.mxu0 0.0
        %426 = vmatpush1.msra.mxu0 0.0
        %427 = vmatprep.subr.mxu0 0.0
        %428 = vmatpush1.msra.mxu0 0.0
        %429 = vmatprep.subr.mxu0 0.0
        %430 = vmatpush1.msra.mxu0 0.0
        %431 = vmatprep.subr.mxu0 0.0
        %432 = vmatpush1.msra.mxu0 0.0
        %433 = vmatprep.subr.mxu0 0.0
        %434 = vmatpush1.msra.mxu0 0.0
        %435 = vmatprep.subr.mxu0 0.0
        %436 = vmatpush1.msra.mxu0 0.0
        %437 = vmatprep.subr.mxu0 0.0
        %438 = vmatpush1.msra.mxu0 0.0
        %439 = vmatprep.subr.mxu0 0.0
        %440 = vmatpush1.msra.mxu0 0.0
        %441 = vmatprep.subr.mxu0 0.0
        %442 = vmatpush1.msra.mxu0 0.0
        %443 = vmatprep.subr.mxu0 0.0
        %444 = vmatpush1.msra.mxu0 0.0
        %445 = vmatprep.subr.mxu0 0.0
        %446 = vmatpush1.msra.mxu0 0.0
        %447 = vmatprep.subr.mxu0 0.0
        %448 = vmatpush1.msra.mxu0 0.0
        %449 = vmatprep.subr.mxu0 0.0
        %450 = vmatpush1.msra.mxu0 0.0
        %451 = vmatprep.subr.mxu0 0.0
        %452 = vmatpush1.msra.mxu0 0.0
        %453 = vmatprep.subr.mxu0 0.0
        %454 = vmatpush1.msra.mxu0 0.0
        %455 = vmatprep.subr.mxu0 0.0
        %456 = vmatpush1.msra.mxu0 0.0
        %457 = vmatprep.subr.mxu0 0.0
        %458 = vmatpush1.msra.mxu0 0.0
        %459 = vmatprep.subr.mxu0 0.0
        %460 = vmatpush1.msra.mxu0 0.0
        %461 = vmatprep.subr.mxu0 0.0
        %462 = vmatpush1.msra.mxu0 0.0
        %463 = vmatprep.subr.mxu0 0.0
        %464 = vmatpush1.msra.mxu0 0.0
        %465 = vmatprep.subr.mxu0 0.0
        %466 = vmatpush1.msra.mxu0 0.0
        %467 = vmatprep.subr.mxu0 0.0
        %468 = vmatpush1.msra.mxu0 0.0
        %469 = vmatprep.mubr.f32.mxu0 0.0
        %470 = vmatmul.mubr.f32.gmra.mrb[0].mxu0 %v311
        %v471 = vpop.f32.mrb[0].mxu0
        %v472 = vadd.f32 0.0, %v471
        %v473 = vpop.f32.mrb[0].mxu0
        %474 = vdwg.mxu0
        %476 = vset.pattern.permute.xlu0 0
        %477 = vperm.xlu0 %476, %v400
        %v478 = vpop.permute.xlu0 %477
        %v480 = vmul.f32 %v478, %v472
        %v481 = vld [vmem:[%s303] sm:$0x1]
        %v483 = vlaneseq
        %v484 = vshrl.u32 %v483, 7
        %v485 = vsub.s32 0, %v484
        %v486 = vrot.slane %v481, %v485
        %v488 = vadd.f32 %v480, %v486
        %vm489 = vcmask 130048
        %490 = vst.msk [vmem:[%s300] sm:$0xff] %vm489, %v488
        %s491 = sand.u32 %s165, 1
        %s492 = scalar_lea.sflag [#allocation4], %s491
        %s493 = sand.u32 %s165, 1
        %s494 = smul.addr %s493, 8
        %s495 = scalar_lea.vmem [#allocation8], %s494
        // Predicated region
        $region53: #{tpu_custom_call.1} parent=39 // pred_check
          %p496 = pneg %p175
        $region54: #{tpu_custom_call.1} parent=39 // pred_check_branch
          %498 = sbr.rel (%p496) target = $region56
        $region55: #{tpu_custom_call.1} parent=39 // pred_region
          %s500 = ssub.s32 128, 128
          %501 = vsyncadd %s492, %s500
          %s502 = sadd.s32 %s28, %s27
          %s503 = smul.addr %s502, 128
          %s504 = scalar_lea.hbm %s5, %s503
          %s506 = sshll.u32 %s495, 4
          %s507 = int_to_ptr.vmem [resolvable:$true] %s506
          %509 = dma.vmem_to_hbm [thread:$0]  %s507, 128, %s504, %s492
        $region56: #{tpu_custom_call.1} parent=39 // pred_fallthru
          _
      $region40: #{tpu_custom_call.1} parent=5 // pred_fallthru
        _
      %p510 = scmp.le.s32.totalorder 2, %s18
      // Predicated region
      $region57: #{tpu_custom_call.1} parent=5 // pred_check
        %p511 = pneg %p510
      $region58: #{tpu_custom_call.1} parent=5 // pred_check_branch
        %513 = sbr.rel (%p511) target = $region60
      $region59: #{tpu_custom_call.1} parent=5 // pred_region
        %s514 = ssub.s32 %s18, 2
        // Predicated region
        $region61: #{tpu_custom_call.1} parent=59 // pred_check
          %p515 = pneg %p181
        $region62: #{tpu_custom_call.1} parent=59 // pred_check_branch
          %517 = sbr.rel (%p515) target = $region64
        $region63: #{tpu_custom_call.1} parent=59 // pred_region
          %s518 = sand.u32 %s166, 1
          %s519 = scalar_lea.sflag [#allocation4], %s518
          %s520 = sand.u32 %s166, 1
          %s521 = smul.addr %s520, 8
          %s522 = scalar_lea.vmem [#allocation8], %s521
          %523 = dma.done %s519, 128
        $region64: #{tpu_custom_call.1} parent=59 // pred_fallthru
          _
      $region60: #{tpu_custom_call.1} parent=5 // pred_fallthru
        _
    $region6: #{tpu_custom_call.1} parent=1 // loop_footer
      %s22 = sadd.s32 1, %s18
    $region7: #{tpu_custom_call.1} parent=1 // loop_footer_branch
      %17 = sbr.rel target = $region3
    $region8: #{tpu_custom_call.1} parent=1 // loop_exit
      _
    %524 = vsyncpa [#allocation3], 1
    %s525 = scalar_lea.sflag [#allocation3], 1
    %526 = vsyncpa %s525, 1
    %527 = vsyncpa [#allocation6], 1
    %528 = vsyncpa [#allocation4], 1
    %s529 = scalar_lea.sflag [#allocation4], 1
    %530 = vsyncpa %s529, 1

</llo_original>
